<compile_context>
chip_gen: v6e
topology: v6e:2x2x1
jax: 0.10.0
libtpu: 0.0.40
codegen_flags: <defaults>
</compile_context>

<pallas_src>
import functools

import jax
import jax.numpy as jnp
from jax import lax
from jax.experimental import pallas as pl
from jax.experimental.pallas import tpu as pltpu


# -----------------------------------------------------------------------------
# Small helpers
# -----------------------------------------------------------------------------
def _round_up(x, m):
    return ((x + m - 1) // m) * m


def _tpu_vmem_bytes():
    """Per-core VMEM capacity (conservative fallback if the query fails)."""
    try:
        return max(int(pltpu.get_tpu_info().vmem_capacity_bytes), 32 << 20)
    except Exception:
        return 64 << 20   # v7x per-core VMEM; conservative for v5e/v6e


def _grid_invariant_spec(shape, index_map):
    """Grid-invariant block; single-buffered when the JAX version supports it."""
    try:
        return pl.BlockSpec(shape, index_map, pipeline_mode=pl.Buffered(1))
    except Exception:
        return pl.BlockSpec(shape, index_map)


def _divisors_desc(n):
    return sorted([d for d in range(1, n + 1) if n % d == 0], reverse=True)


# -----------------------------------------------------------------------------
# Encoder kernel: row-tiled linear projection + fused L2 normalization (+scale)
# -----------------------------------------------------------------------------
def _linear_normalize_kernel(scale, matmul_dtype, x_ref, w_ref, b_ref, o_ref):
    x = x_ref[...]
    w = w_ref[...]
    if matmul_dtype is not None:
        x = x.astype(matmul_dtype)
        w = w.astype(matmul_dtype)
    y = jnp.dot(x, w, preferred_element_type=jnp.float32) + b_ref[...]
    nsq = jnp.sum(y * y, axis=-1, keepdims=True)
    # F.normalize (eps=1e-12), with an optional constant fold (lambda_softmax)
    # applied on top; rsqrt runs on the EUP slot.
    o_ref[...] = (y * (scale * lax.rsqrt(jnp.maximum(nsq, 1e-24)))).astype(o_ref.dtype)


def _pick_enc_tm(din, dout, out_bytes, budget):
    tm = 1024
    while tm > 64:
        est = (2 * tm * _round_up(din, 128) * 4                 # x block (double buffered)
               + 2 * _round_up(din, 8) * _round_up(dout, 128) * 4  # weights
               + 2 * tm * _round_up(dout, 128) * out_bytes       # output block
               + 2 * tm * _round_up(dout, 128) * 4)              # f32 temporaries
        if est <= budget:
            break
        tm //= 2
    return tm


def pallas_linear_normalize(x, w, b, *, scale=1.0, matmul_dtype=None,
                            out_dtype=jnp.float32, tm=None):
    """x: (N, Din), w: (Din, Dout), b: (Dout,) -> scale * L2-normalized rows."""
    n, din = x.shape
    dout = w.shape[1]
    vmem = _tpu_vmem_bytes()
    if tm is None:
        tm = _pick_enc_tm(din, dout, jnp.dtype(out_dtype).itemsize, int(vmem * 0.45))
    tm = max(min(tm, n), 1)

    kernel = functools.partial(_linear_normalize_kernel, float(scale), matmul_dtype)
    return pl.pallas_call(
        kernel,
        out_shape=jax.ShapeDtypeStruct((n, dout), out_dtype),
        grid=(pl.cdiv(n, tm),),
        in_specs=[
            pl.BlockSpec((tm, din), lambda i: (i, 0)),
            _grid_invariant_spec((din, dout), lambda i: (0, 0)),
            _grid_invariant_spec((1, dout), lambda i: (0, 0)),
        ],
        out_specs=pl.BlockSpec((tm, dout), lambda i: (i, 0)),
        compiler_params=pltpu.CompilerParams(
            dimension_semantics=("parallel",),
            vmem_limit_bytes=min(int(vmem * 0.8), 96 << 20)),
    )(x, w, b.reshape(1, dout))


# -----------------------------------------------------------------------------
# SCAN cross-attention similarity kernel.
#   grid = (image-block b OUTER, caption-block c INNER).  The image block is
#   resident in VMEM across the inner axis; per step one caption block (tc
#   captions) is scored against the whole image block.  The output is one
#   lane-dense (tc, img_block) tile of the (Bc, Bi) similarity matrix.
# -----------------------------------------------------------------------------
def _scan_sim_kernel(R, ib, tc, cache_invariants,
                     cap_ref, img_ref, tokw_ref, out_ref,
                     e_scr, sel_scr, gram_scr):
    c_blk = pl.program_id(1)
    ibR = ib * R
    tcT = cap_ref.shape[0]          # tc * T
    T = tcT // tc
    unroll = ib if ib <= 8 else 8

    # ---- per-image-block pre-pass (caption-invariant): selector + Grams -----
    def _build_invariants():
        grp = lax.broadcasted_iota(jnp.int32, (ib, ibR), 1) // R
        row_id = lax.broadcasted_iota(jnp.int32, (ib, ibR), 0)
        sel_scr[...] = (grp == row_id).astype(sel_scr.dtype)

        def gram_body(i, carry):
            r0 = pl.multiple_of(i * R, R)
            img_i = img_ref[pl.ds(r0, R), :]                           # (R, E)
            gram_scr[pl.ds(r0, R), :] = lax.dot_general(
                img_i, img_i, (((1,), (1,)), ((), ())),
                preferred_element_type=jnp.float32)                    # (R, R)
            return carry

        lax.fori_loop(0, ib, gram_body, 0, unroll=unroll)

    if cache_invariants:
        pl.when(c_blk == 0)(_build_invariants)
    else:
        _build_invariants()

    # ---- scores: one MXU matmul, whole image block x whole caption block ----
    img = img_ref[...]                                                 # (ibR, E)
    cap = cap_ref[...]                                                 # (tcT, E), unit-norm * lambda
    s = lax.dot_general(img, cap, (((1,), (1,)), ((), ())),
                        preferred_element_type=jnp.float32)            # (ibR, tcT)

    # Shared per-column stabilizer: any per-column constant is valid because
    # the per-image softmax normalization cancels in numer/denom and in
    # sqrt(nsq)/denom.  Keeps exp() bounded.
    m = jnp.max(s, axis=0, keepdims=True)                              # (1, tcT)
    ex = jnp.exp(s - m)                                                # (ibR, tcT) f32
    e_scr[...] = ex

    sel = sel_scr[...]                                                 # (ib, ibR), matmul dtype
    mmt = sel.dtype
    denom = jnp.dot(sel, ex.astype(mmt),
                    preferred_element_type=jnp.float32)                # (ib, tcT)
    numer = jnp.dot(sel, (ex * s).astype(mmt),
                    preferred_element_type=jnp.float32)                # (ib, tcT), lambda-scaled

    # ---- per-image squared attention norms via the Gram quadratic form ------
    # e_scr rows are overwritten in place with ex ⊙ (G_i @ ex); one selector
    # matmul then gives nsq[i,:] = ex_iᵀ G_i ex_i = ||Σ_r ex_r img_r||².
    def gram_apply(i, carry):
        r0 = pl.multiple_of(i * R, R)
        e_i = e_scr[pl.ds(r0, R), :]                                   # (R, tcT)
        g_i = gram_scr[pl.ds(r0, R), :]                                # (R, R)
        ge = jnp.dot(g_i, e_i, preferred_element_type=jnp.float32)     # (R, tcT)
        e_scr[pl.ds(r0, R), :] = e_i * ge
        return carry

    lax.fori_loop(0, ib, gram_apply, 0, unroll=unroll)

    nsq = jnp.dot(sel, e_scr[...].astype(mmt),
                  preferred_element_type=jnp.float32)                  # (ib, tcT)
    att_norm_u = jnp.sqrt(jnp.maximum(nsq, 0.0))                       # = denom * ||att||

    # cosine(cap, att) with unit-norm captions (before the lambda fold):
    #   numer / max(att_norm_u, 1e-8*denom) == lambda * (cap.att)/max(||att||,1e-8)
    cos = numer / jnp.maximum(att_norm_u, 1e-8 * denom)                # (ib, tcT)

    # ---- masked, length-normalized mean -> lane-dense (tc, ib) output tile --
    # tokw carries (token < len) / (lambda * len); capsel collapses each
    # caption's token range; one small f32 matmul writes the output tile.
    cosw = cos * tokw_ref[...]                                         # (ib, tcT)
    col = lax.broadcasted_iota(jnp.int32, (tc, tcT), 1) // T
    row = lax.broadcasted_iota(jnp.int32, (tc, tcT), 0)
    capsel = (col == row).astype(jnp.float32)                          # (tc, tcT)
    out_ref[...] = lax.dot_general(capsel, cosw, (((1,), (1,)), ((), ())),
                                   preferred_element_type=jnp.float32)  # (tc, ib)


def _sim_vmem_estimate(ib, tc, R, T, E, emb_bytes):
    ibR, tcT = ib * R, tc * T
    est = 2 * ibR * _round_up(E, 128) * emb_bytes        # image block (double buffered)
    est += 2 * tcT * _round_up(E, 128) * emb_bytes       # caption block
    est += 2 * _round_up(tcT, 128) * 4                   # token-weight row
    est += ibR * _round_up(tcT, 128) * 4                 # e_scr
    est += 3 * ibR * _round_up(tcT, 128) * 4             # s / ex / ex*s temporaries
    est += ib * _round_up(ibR, 128) * emb_bytes          # selector
    est += ibR * _round_up(R, 128) * 4                   # Gram matrices
    est += 6 * ib * _round_up(tcT, 128) * 4              # denom/numer/nsq/cos temporaries
    est += 2 * _round_up(tc, 8) * _round_up(ib, 128) * 4  # output tile
    return est


def _pick_cap_block(bc, max_tc=8):
    if bc <= max_tc:
        return bc
    divs = [d for d in range(1, max_tc + 1) if bc % d == 0]
    aligned = [d for d in divs if d % 8 == 0]
    return (aligned or divs)[-1]


def _pick_img_block(bi, tc, R, T, E, emb_bytes, budget):
    divs = _divisors_desc(bi)
    fits = [d for d in divs if _sim_vmem_estimate(d, tc, R, T, E, emb_bytes) <= budget]
    for d in fits:                       # prefer lane-dense (multiple-of-128) output tiles
        if d % 128 == 0:
            return d
    if fits:
        return fits[0]                   # largest divisor that fits the budget
    return divs[-1]                      # degenerate fallback: smallest divisor


def scan_similarity(cap_embs, img_embs, cap_lens, lambda_softmax, *,
                    img_block=None, cap_block=None, matmul_dtype=None,
                    cap_prescaled=False):
    """cap_embs: (Bc,T,E), img_embs: (Bi,R,E); rows L2-normalized.

    If cap_prescaled, cap_embs have already been multiplied by lambda_softmax
    (e.g. folded into the text encoder); otherwise they are scaled once here.
    Returns the (Bc, Bi) similarity matrix.
    """
    bc, seq_len, embed = cap_embs.shape
    bi, regions, _ = img_embs.shape
    emb_dtype = matmul_dtype if matmul_dtype is not None else jnp.float32
    emb_bytes = jnp.dtype(emb_dtype).itemsize

    vmem = _tpu_vmem_bytes()
    vmem_limit = min(int(vmem * 0.8), 96 << 20)
    budget = int(vmem * 0.55)

    tc = cap_block if cap_block is not None else _pick_cap_block(bc)
    assert bc % tc == 0, (bc, tc)
    ib = img_block if img_block is not None else _pick_img_block(
        bi, tc, regions, seq_len, embed, emb_bytes, budget)
    assert bi % ib == 0, (bi, ib)
    n_cb, n_ib = bc // tc, bi // ib
    tcT = tc * seq_len

    cap = cap_embs if cap_prescaled else cap_embs * lambda_softmax
    cap = cap.astype(emb_dtype).reshape(bc * seq_len, embed)
    img = img_embs.astype(emb_dtype).reshape(bi * regions, embed)

    # Per-token weights (token < len) / (lambda * len); len >= 1 guard gives
    # well-defined (zero) rows for degenerate zero-length captions.
    lens = cap_lens.astype(jnp.int32)
    lens_f = jnp.maximum(lens, 1).astype(jnp.float32)
    tokw = ((jnp.arange(seq_len)[None, :] < lens[:, None]).astype(jnp.float32)
            / (float(lambda_softmax) * lens_f)[:, None]).reshape(n_cb, tcT)

    # If only the caption axis has parallelism, let megacore split it and
    # recompute the (cheap, amortizable) invariants every step instead of
    # relying on sequential caption order.
    multi_core_captions = (n_ib == 1 and n_cb > 1)
    cache_invariants = not multi_core_captions
    dims = ("arbitrary", "parallel") if multi_core_captions else ("parallel", "arbitrary")

    kernel = functools.partial(_scan_sim_kernel, regions, ib, tc, cache_invariants)

    return pl.pallas_call(
        kernel,
        out_shape=jax.ShapeDtypeStruct((bc, bi), jnp.float32),
        grid_spec=pltpu.PrefetchScalarGridSpec(
            num_scalar_prefetch=0,
            grid=(n_ib, n_cb),          # image block OUTER -> resident across captions
            in_specs=[
                pl.BlockSpec((tcT, embed), lambda b, c: (c, 0)),
                pl.BlockSpec((ib * regions, embed), lambda b, c: (b, 0)),
                pl.BlockSpec((1, tcT), lambda b, c: (c, 0)),
            ],
            out_specs=pl.BlockSpec((tc, ib), lambda b, c: (c, b)),
            scratch_shapes=[
                pltpu.VMEM((ib * regions, tcT), jnp.float32),      # ex / ex*(G ex)
                pltpu.VMEM((ib, ib * regions), emb_dtype),         # group-sum selector
                pltpu.VMEM((ib * regions, regions), jnp.float32),  # per-image Gram matrices
            ],
        ),
        compiler_params=pltpu.CompilerParams(
            dimension_semantics=dims,
            vmem_limit_bytes=vmem_limit),
    )(cap, img, tokw)


# -----------------------------------------------------------------------------
# Full SCAN forward (encoders + cross-attention similarity)
# -----------------------------------------------------------------------------
def scan_forward(images, captions, cap_lens, params, lambda_softmax, *,
                 matmul_dtype=None, img_block=None, cap_block=None):
    b_img, regions, img_dim = images.shape
    b_cap, seq_len, word_dim = captions.shape
    embed = params["w_img"].shape[1]
    emb_dtype = matmul_dtype if matmul_dtype is not None else jnp.float32

    # Encoders (linear projections) with F.normalize fused into the epilogue.
    img_embs = pallas_linear_normalize(
        images.reshape(b_img * regions, img_dim), params["w_img"], params["b_img"],
        matmul_dtype=matmul_dtype, out_dtype=emb_dtype,
    ).reshape(b_img, regions, embed)

    # lambda_softmax is folded into the caption embeddings (saves one full
    # (ibR, tcT) VPU multiply per similarity grid step); the similarity kernel
    # divides it back out in the per-token weights.
    cap_embs = pallas_linear_normalize(
        captions.reshape(b_cap * seq_len, word_dim), params["w_txt"], params["b_txt"],
        scale=float(lambda_softmax), matmul_dtype=matmul_dtype, out_dtype=emb_dtype,
    ).reshape(b_cap, seq_len, embed)

    return scan_similarity(cap_embs, img_embs, cap_lens, lambda_softmax,
                           img_block=img_block, cap_block=cap_block,
                           matmul_dtype=matmul_dtype, cap_prescaled=True)


# -----------------------------------------------------------------------------
# Pure-JAX reference (same math as the PyTorch module, used for the checks)
# -----------------------------------------------------------------------------
def scan_reference(images, captions, cap_lens, params, lambda_softmax):
    img_embs = images @ params["w_img"] + params["b_img"]
    cap_embs = captions @ params["w_txt"] + params["b_txt"]

    def normalize(x):
        return x / jnp.maximum(jnp.linalg.norm(x, axis=-1, keepdims=True), 1e-12)

    img_n = normalize(img_embs)               # (Bi, R, E)
    cap_n = normalize(cap_embs)               # (Bc, T, E)

    sim = jnp.einsum("ctd,ird->citr", cap_n, img_n)      # (Bc, Bi, T, R)
    att_score = lambda_softmax * sim
    w = jax.nn.softmax(att_score, axis=-1)
    att = jnp.einsum("citr,ird->citd", w, img_n)         # (Bc, Bi, T, E)

    num = jnp.sum(cap_n[:, None] * att, axis=-1)
    cn = jnp.maximum(jnp.linalg.norm(cap_n, axis=-1), 1e-8)[:, None]
    an = jnp.maximum(jnp.linalg.norm(att, axis=-1), 1e-8)
    cos = num / (cn * an)                                 # (Bc, Bi, T)

    t_ids = jnp.arange(cap_n.shape[1])
    valid = (t_ids[None, :] < cap_lens[:, None])[:, None, :]   # (Bc, 1, T)
    r = jnp.where(valid, cos, 0.0)
    return jnp.sum(r, axis=-1) / cap_lens[:, None].astype(jnp.float32)


def init_params(key, img_dim, word_dim, embed_size):
    k1, k2, k3, k4 = jax.random.split(key, 4)
    bi = 1.0 / jnp.sqrt(img_dim)
    bt = 1.0 / jnp.sqrt(word_dim)
    return {
        "w_img": jax.random.uniform(k1, (img_dim, embed_size), jnp.float32, -bi, bi),
        "b_img": jax.random.uniform(k2, (embed_size,), jnp.float32, -bi, bi),
        "w_txt": jax.random.uniform(k3, (word_dim, embed_size), jnp.float32, -bt, bt),
        "b_txt": jax.random.uniform(k4, (embed_size,), jnp.float32, -bt, bt),
    }


if __name__ == "__main__":
    regions, seq_len = 16, 8
    img_dim, word_dim, embed_size = 24, 20, 32
    lambda_softmax = 9.0
    # vocab_size / grad_clip are unused in the forward pass.

    key = jax.random.PRNGKey(0)
    k_img, k_cap, k_par, k_img2, k_cap2 = jax.random.split(key, 5)
    params = init_params(k_par, img_dim, word_dim, embed_size)

    # --- small single-step check: f32 (tight) and bf16 (throughput) paths ---
    batch = 2
    images = jax.random.normal(k_img, (batch, regions, img_dim), jnp.float32)
    captions = jax.random.normal(k_cap, (batch, seq_len, word_dim), jnp.float32)
    cap_lens = jnp.array([8, 5], dtype=jnp.int32)

    ref = scan_reference(images, captions, cap_lens, params, lambda_softmax)

    sim_scores = scan_forward(images, captions, cap_lens, params, lambda_softmax)
    sim_scores = jax.block_until_ready(sim_scores)
    assert sim_scores.shape == (batch, batch)
    assert jnp.allclose(sim_scores, ref, rtol=1e-3, atol=1e-3), (sim_scores, ref)

    # bf16 MXU inputs with f32 accumulation (encoder emits bf16 embeddings);
    # looser tolerance, still catches structural/masking bugs.
    sim_bf16 = scan_forward(images, captions, cap_lens, params, lambda_softmax,
                            matmul_dtype=jnp.bfloat16)
    sim_bf16 = jax.block_until_ready(sim_bf16)
    assert jnp.allclose(sim_bf16, ref, rtol=5e-2, atol=5e-2), (sim_bf16, ref)

    # --- multi-block grid (2 image blocks x 2 caption blocks): exercises the
    #     image-block residency + per-block Gram/selector caching paths ------
    bc2, bi2 = 16, 256
    images2 = jax.random.normal(k_img2, (bi2, regions, img_dim), jnp.float32)
    captions2 = jax.random.normal(k_cap2, (bc2, seq_len, word_dim), jnp.float32)
    cap_lens2 = jax.random.randint(jax.random.PRNGKey(1), (bc2,), 1, seq_len + 1
                                   ).astype(jnp.int32)

    ref2 = scan_reference(images2, captions2, cap_lens2, params, lambda_softmax)
    out2 = scan_forward(images2, captions2, cap_lens2, params, lambda_softmax,
                        img_block=128, cap_block=8)
    out2 = jax.block_until_ready(out2)
    assert out2.shape == (bc2, bi2)
    assert jnp.allclose(out2, ref2, rtol=1e-3, atol=1e-3), \
        float(jnp.max(jnp.abs(out2 - ref2)))

    print("KERNEL_OK")
</pallas_src>

<mosaic_0001>
module attributes {stable_mosaic.version = 11 : i64} {
  func.func @_linear_normalize_kernel(%arg0: i32, %arg1: memref<32x24xf32, #tpu.memory_space<vmem>>, %arg2: memref<24x32xf32, #tpu.memory_space<vmem>>, %arg3: memref<1x32xf32, #tpu.memory_space<vmem>>, %arg4: memref<32x32xf32, #tpu.memory_space<vmem>>) attributes {dimension_semantics = [#tpu.dimension_semantics<parallel>], iteration_bounds = array<i64: 1>, scalar_prefetch = 0 : i64, scratch_operands = 0 : i64, tpu.core_type = #tpu.core_type<tc>, window_params = [{transform_indices = @transform_0, window_bounds = array<i64: 32, 24>}, {pipeline_mode = #tpu.pipeline_mode<synchronous>, transform_indices = @transform_1, window_bounds = array<i64: 24, 32>}, {pipeline_mode = #tpu.pipeline_mode<synchronous>, transform_indices = @transform_2, window_bounds = array<i64: 1, 32>}, {transform_indices = @transform_3, window_bounds = array<i64: 32, 32>}]} {
    %c0 = arith.constant 0 : index
    %c0_0 = arith.constant 0 : index
    %0 = vector.load %arg1[%c0, %c0_0] : memref<32x24xf32, #tpu.memory_space<vmem>>, vector<32x24xf32>
    %c0_1 = arith.constant 0 : index
    %c0_2 = arith.constant 0 : index
    %1 = vector.load %arg2[%c0_1, %c0_2] : memref<24x32xf32, #tpu.memory_space<vmem>>, vector<24x32xf32>
    %cst = arith.constant dense<0.000000e+00> : vector<32x32xf32>
    %2 = tpu.matmul %0, %1, %cst {dimension_numbers = #tpu.dot_dimension_numbers<[1], [0], [0], [1], [0, 0, 1, 1], [], []>} : vector<32x24xf32>, vector<24x32xf32>, vector<32x32xf32> -> vector<32x32xf32>
    %c0_3 = arith.constant 0 : index
    %c0_4 = arith.constant 0 : index
    %3 = vector.load %arg3[%c0_3, %c0_4] : memref<1x32xf32, #tpu.memory_space<vmem>>, vector<1x32xf32>
    %4 = vector.broadcast %3 : vector<1x32xf32> to vector<32x32xf32>
    %5 = arith.addf %2, %4 : vector<32x32xf32>
    %6 = arith.mulf %5, %5 : vector<32x32xf32>
    %cst_5 = arith.constant dense<0.000000e+00> : vector<32xf32>
    %7 = vector.multi_reduction <add>, %6, %cst_5 [1] : vector<32x32xf32> to vector<32xf32>
    %8 = vector.shape_cast %7 : vector<32xf32> to vector<32x1xf32>
    %cst_6 = arith.constant 1.000000e-24 : f32
    %9 = vector.broadcast %cst_6 : f32 to vector<32x1xf32>
    %10 = arith.maximumf %8, %9 : vector<32x1xf32>
    %11 = math.rsqrt %10 : vector<32x1xf32>
    %cst_7 = arith.constant 1.000000e+00 : f32
    %12 = vector.broadcast %cst_7 : f32 to vector<32x1xf32>
    %13 = arith.mulf %12, %11 : vector<32x1xf32>
    %14 = vector.broadcast %13 : vector<32x1xf32> to vector<32x32xf32>
    %15 = arith.mulf %5, %14 : vector<32x32xf32>
    %c0_8 = arith.constant 0 : index
    %c0_9 = arith.constant 0 : index
    %16 = vector.load %arg4[%c0_8, %c0_9] : memref<32x32xf32, #tpu.memory_space<vmem>>, vector<32x32xf32>
    tpu.vector_store %arg4[%c0_8, %c0_9], %15 {strides = array<i32>} : memref<32x32xf32, #tpu.memory_space<vmem>>, vector<32x32xf32>,
    return
  }
  func.func @transform_0(%arg0: i32) -> (i32, i32) {
    %c0_i32 = arith.constant 0 : i32
    %c0_i32_0 = arith.constant 0 : i32
    return %arg0, %c0_i32 : i32, i32
  }
  func.func @transform_1(%arg0: i32) -> (i32, i32) {
    %c0_i32 = arith.constant 0 : i32
    %c0_i32_0 = arith.constant 0 : i32
    %c0_i32_1 = arith.constant 0 : i32
    return %c0_i32, %c0_i32_0 : i32, i32
  }
  func.func @transform_2(%arg0: i32) -> (i32, i32) {
    %c0_i32 = arith.constant 0 : i32
    %c0_i32_0 = arith.constant 0 : i32
    %c0_i32_1 = arith.constant 0 : i32
    return %c0_i32, %c0_i32_0 : i32, i32
  }
  func.func @transform_3(%arg0: i32) -> (i32, i32) {
    %c0_i32 = arith.constant 0 : i32
    %c0_i32_0 = arith.constant 0 : i32
    return %arg0, %c0_i32 : i32, i32
  }
}

</mosaic_0001>

<llo_original>
// kernel: tpu_custom_call.1
$region0: #{tpu_custom_call.1}
  #allocation0 [shape = 'u32[]', space=smem, size = 0x4, offset = 0x4, fixed_abs, tag = 'smem constant byte address 0x4 - core index']
  #allocation1 [shape = 'u32[144,128]{1,0:T(1,128)}', space=vmem, size = 0x12000, scoped, tag = 'internal scratch']
  %s0 = inlined_call_operand.vmem [shape: f32[32,24], index: 0, kind: input, shape index: {}]
  %s1 = inlined_call_operand.vmem [shape: f32[24,32], index: 1, kind: input, shape index: {}]
  %s2 = inlined_call_operand.vmem [shape: f32[1,32], index: 2, kind: input, shape index: {}]
  %s3 = inlined_call_operand.hbm [shape: f32[32,32], index: 3, kind: output, shape index: {}]
  %s4 = sld [smem:[#allocation0]]
  $region22: #{tpu_custom_call.1} parent=0
    _
  %s6 = ssub.s32 1, %s4
  %s7 = scalar_select 0, %s6, %s4
  $region1: #{tpu_custom_call.1} parent=0
    #allocation2 [shape = 'u8[16384]{0}', space=vmem, size = 0x4000, scoped, tag = 'output window, operand 0, single buffered']
    #allocation3 [shape = 's32[1]{0}', space=sflag, size = 0x4, scoped, tag = 'scoped memory for tpu_custom_call.1']
    %8 = vsyncpa [#allocation3], 0
    // Predicated region
    $region2: #{tpu_custom_call.1} parent=1 // pred_check
      _
    $region3: #{tpu_custom_call.1} parent=1 // pred_check_branch
      %10 = sbr.rel (0) target = $region5
    $region4: #{tpu_custom_call.1} parent=1 // pred_region
      _
    $region5: #{tpu_custom_call.1} parent=1 // pred_fallthru
      _
    // Predicated region
    $region6: #{tpu_custom_call.1} parent=1 // pred_check
      _
    $region7: #{tpu_custom_call.1} parent=1 // pred_check_branch
      %12 = sbr.rel (0) target = $region9
    $region8: #{tpu_custom_call.1} parent=1 // pred_region
      _
    $region9: #{tpu_custom_call.1} parent=1 // pred_fallthru
      _
    // Predicated region
    $region10: #{tpu_custom_call.1} parent=1 // pred_check
      _
    $region11: #{tpu_custom_call.1} parent=1 // pred_check_branch
      %14 = sbr.rel (0) target = $region13
    $region12: #{tpu_custom_call.1} parent=1 // pred_region
      _
    $region13: #{tpu_custom_call.1} parent=1 // pred_fallthru
      _
    %v15 = vld [vmem:[%s0] sm:$0xff]
    %v16 = vld [vmem:[%s0 + $0x8] sm:$0xff]
    %v17 = vld [vmem:[%s0 + $0x10] sm:$0xff]
    %v18 = vld [vmem:[%s0 + $0x18] sm:$0xff]
    %v19 = vld [vmem:[%s1] sm:$0xff]
    %v20 = vld [vmem:[%s1 + $0x8] sm:$0xff]
    %v21 = vld [vmem:[%s1 + $0x10] sm:$0xff]
    %v22 = vld [vmem:[%s2] sm:$0x1]
    %v24 = vlaneseq
    %v25 = vshrl.u32 %v24, 7
    %v26 = vsub.s32 0, %v25
    %v27 = vrot.slane %v22, %v26
    %vm29 = vcmask 195584
    %v31 = vsel %vm29, %v15, 0
    %v34 = vsel %vm29, %v16, 0
    %v37 = vsel %vm29, %v17, 0
    %v40 = vsel %vm29, %v18, 0
    %42 = vmatprep.subr.mxu0 0.0
    %43 = vmatpush1.msra.mxu0 0.0
    %44 = vmatprep.subr.mxu0 0.0
    %45 = vmatpush1.msra.mxu0 0.0
    %46 = vmatprep.subr.mxu0 0.0
    %47 = vmatpush1.msra.mxu0 0.0
    %48 = vmatprep.subr.mxu0 0.0
    %49 = vmatpush1.msra.mxu0 0.0
    %50 = vmatprep.subr.mxu0 0.0
    %51 = vmatpush1.msra.mxu0 0.0
    %52 = vmatprep.subr.mxu0 0.0
    %53 = vmatpush1.msra.mxu0 0.0
    %54 = vmatprep.subr.mxu0 0.0
    %55 = vmatpush1.msra.mxu0 0.0
    %56 = vmatprep.subr.mxu0 0.0
    %57 = vmatpush1.msra.mxu0 0.0
    %58 = vmatprep.subr.mxu0 0.0
    %59 = vmatpush1.msra.mxu0 0.0
    %60 = vmatprep.subr.mxu0 0.0
    %61 = vmatpush1.msra.mxu0 0.0
    %62 = vmatprep.subr.mxu0 0.0
    %63 = vmatpush1.msra.mxu0 0.0
    %64 = vmatprep.subr.mxu0 0.0
    %65 = vmatpush1.msra.mxu0 0.0
    %66 = vmatprep.subr.mxu0 0.0
    %67 = vmatpush1.msra.mxu0 0.0
    %68 = vmatprep.subr.mxu0 0.0
    %69 = vmatpush1.msra.mxu0 %v21
    %70 = vmatprep.subr.mxu0 0.0
    %71 = vmatpush1.msra.mxu0 %v20
    %72 = vmatprep.subr.mxu0 0.0
    %73 = vmatpush1.msra.mxu0 %v19
    %74 = vmatprep.subr.mxu0 0.0
    %75 = vmatpush2.msra.mxu0 0.0
    %76 = vmatprep.subr.mxu0 0.0
    %77 = vmatpush2.msra.mxu0 0.0
    %78 = vmatprep.subr.mxu0 0.0
    %79 = vmatpush2.msra.mxu0 0.0
    %80 = vmatprep.subr.mxu0 0.0
    %81 = vmatpush2.msra.mxu0 0.0
    %82 = vmatprep.subr.mxu0 0.0
    %83 = vmatpush2.msra.mxu0 0.0
    %84 = vmatprep.subr.mxu0 0.0
    %85 = vmatpush2.msra.mxu0 0.0
    %86 = vmatprep.subr.mxu0 0.0
    %87 = vmatpush2.msra.mxu0 0.0
    %88 = vmatprep.subr.mxu0 0.0
    %89 = vmatpush2.msra.mxu0 0.0
    %90 = vmatprep.subr.mxu0 0.0
    %91 = vmatpush2.msra.mxu0 0.0
    %92 = vmatprep.subr.mxu0 0.0
    %93 = vmatpush2.msra.mxu0 0.0
    %94 = vmatprep.subr.mxu0 0.0
    %95 = vmatpush2.msra.mxu0 0.0
    %96 = vmatprep.subr.mxu0 0.0
    %97 = vmatpush2.msra.mxu0 0.0
    %98 = vmatprep.subr.mxu0 0.0
    %99 = vmatpush2.msra.mxu0 0.0
    %100 = vmatprep.subr.mxu0 0.0
    %101 = vmatpush2.msra.mxu0 0.0
    %102 = vmatprep.subr.mxu0 0.0
    %103 = vmatpush2.msra.mxu0 0.0
    %104 = vmatprep.subr.mxu0 0.0
    %105 = vmatpush2.msra.mxu0 0.0
    %106 = vmatprep.mubr.f32.mxu0 0.0
    %107 = vmatmul.mubr.f32.gmra.mxu0 %v31
    %v108 = vpop.f32.mrf.mxu0
    %v109 = vadd.f32 %v27, %v108
    %v110 = vpop.f32.mrf.mxu0
    %111 = vmatprep.mubr.f32.mxu0 0.0
    %112 = vmatmul.mubr.f32.gmra.mxu0 %v34
    %v113 = vpop.f32.mrf.mxu0
    %v114 = vadd.f32 %v27, %v113
    %v115 = vpop.f32.mrf.mxu0
    %116 = vmatprep.mubr.f32.mxu0 0.0
    %117 = vmatmul.mubr.f32.gmra.mxu0 %v37
    %v118 = vpop.f32.mrf.mxu0
    %v119 = vadd.f32 %v27, %v118
    %v120 = vpop.f32.mrf.mxu0
    %121 = vmatprep.mubr.f32.mxu0 0.0
    %122 = vmatmul.mubr.f32.gmra.mxu0 %v40
    %v123 = vpop.f32.mrf.mxu0
    %v124 = vadd.f32 %v27, %v123
    %v125 = vpop.f32.mrf.mxu0
    %126 = vdwg.mxu0
    %v127 = vmul.f32 %v109, %v109
    %v128 = vmul.f32 %v114, %v114
    %v129 = vmul.f32 %v119, %v119
    %v130 = vmul.f32 %v124, %v124
    %vm131 = vcmask 261120
    %v132 = vsel %vm131, %v127, 0.0
    %133 = vadd.xlane.f32.xlu0 %v132
    %v134 = vpop.xlane.xlu0 %133
    %v135 = vsel %vm131, %v128, 0.0
    %136 = vadd.xlane.f32.xlu0 %v135
    %v137 = vpop.xlane.xlu0 %136
    %v138 = vsel %vm131, %v129, 0.0
    %139 = vadd.xlane.f32.xlu0 %v138
    %v140 = vpop.xlane.xlu0 %139
    %v141 = vsel %vm131, %v130, 0.0
    %142 = vadd.xlane.f32.xlu0 %v141
    %v143 = vpop.xlane.xlu0 %142
    %v144 = vmax.f32 %v134, 1e-24
    %v145 = vmax.f32 %v137, 1e-24
    %v146 = vmax.f32 %v140, 1e-24
    %v147 = vmax.f32 %v143, 1e-24
    %v148 = vrsqrt.pop %v144
    %v149 = vrsqrt.pop %v145
    %v150 = vrsqrt.pop %v146
    %v151 = vrsqrt.pop %v147
    %v152 = vmul.f32 %v109, %v148
    %v153 = vmul.f32 %v114, %v149
    %v154 = vmul.f32 %v119, %v150
    %v155 = vmul.f32 %v124, %v151
    %156 = vst.msk [vmem:[#allocation2] sm:$0xff] %vm131, %v152
    %157 = vst.msk [vmem:[#allocation2 + $0x8] sm:$0xff] %vm131, %v153
    %158 = vst.msk [vmem:[#allocation2 + $0x10] sm:$0xff] %vm131, %v154
    %159 = vst.msk [vmem:[#allocation2 + $0x18] sm:$0xff] %vm131, %v155
    // Predicated region
    $region14: #{tpu_custom_call.1} parent=1 // pred_check
      _
    $region15: #{tpu_custom_call.1} parent=1 // pred_check_branch
      %161 = sbr.rel (0) target = $region17
    $region16: #{tpu_custom_call.1} parent=1 // pred_region
      %s163 = ssub.s32 512, 512
      %164 = vsyncadd [#allocation3], %s163
      %s165 = sshll.u32 [#allocation2], 4
      %s166 = int_to_ptr.vmem [resolvable:$true] %s165
      %171 = dma.vmem_to_hbm [thread:$0]  %s166, 512, %s3, [#allocation3], 128, 128, 8
    $region17: #{tpu_custom_call.1} parent=1 // pred_fallthru
      _
    // Predicated region
    $region18: #{tpu_custom_call.1} parent=1 // pred_check
      _
    $region19: #{tpu_custom_call.1} parent=1 // pred_check_branch
      %173 = sbr.rel (0) target = $region21
    $region20: #{tpu_custom_call.1} parent=1 // pred_region
      %174 = dma.done [#allocation3], 512
    $region21: #{tpu_custom_call.1} parent=1 // pred_fallthru
      _
    %175 = vsyncpa [#allocation3], 1

</llo_original>
